<compile_context>
chip_gen: v5e
topology: v5e:2x2
jax: 0.10.0
libtpu: 0.0.40
codegen_flags: <defaults>
</compile_context>

<pallas_src>
import functools

import jax
import jax.numpy as jnp
from jax import lax
from jax.experimental import pallas as pl
from jax.experimental.pallas import tpu as pltpu

_LANE = 128
_CHUNK = 8192  # lanes per inner compute step (bounds VMEM temporaries)


def _round_up(a, b):
    return ((a + b - 1) // b) * b


def _vmem_capacity_bytes():
    try:
        info = pltpu.get_tpu_info()
        cap = getattr(info, "vmem_capacity_bytes", None)
        if cap:
            return int(cap)
    except Exception:
        pass
    return 64 * 1024 * 1024  # conservative (v7x-sized) fallback


def _soft_dice_kernel(x_ref, t_ref, inter_ref, s12_ref, acc_i_ref, acc_s_ref,
                      *, d, td, kps, k_steps, ns, apply_sigmoid):
    # Grid: (split, row-group, reduction-step); reduction step is innermost.
    s = pl.program_id(0)
    k = pl.program_id(2)
    global_k = s * kps + k

    tn = x_ref.shape[0]
    cw_max = min(_CHUNK, td)
    ragged = (d % td) != 0

    @pl.when(k == 0)
    def _init():
        acc_i_ref[...] = jnp.zeros_like(acc_i_ref)
        acc_s_ref[...] = jnp.zeros_like(acc_s_ref)

    # Hoisted iota (only needed when some chunk can overlap the ragged tail).
    col_iota = None
    if ragged:
        col_iota = lax.broadcasted_iota(jnp.int32, (tn, cw_max), 1)

    def _accumulate():
        base_col = global_k * td
        # Static chunk loop: offsets are compile-time constants, temporaries
        # are bounded to a few (tn, _CHUNK) f32 arrays.
        for off in range(0, td, _CHUNK):
            cw = min(_CHUNK, td - off)
            x = x_ref[:, off:off + cw].astype(jnp.float32)
            t = t_ref[:, off:off + cw].astype(jnp.float32)
            if apply_sigmoid:
                x = jax.nn.sigmoid(x)  # EUP, hidden under the block DMA
            prod = x * t
            ssum = x + t  # sum(x) + sum(t) fused as sum(x + t)
            # Mask only the chunk positions that can reach past column d
            # (true only in the last reduction tile; all-true elsewhere).
            if ragged and (k_steps - 1) * td + off + cw > d:
                col = col_iota[:, :cw] + (base_col + off)
                valid = col < d
                prod = jnp.where(valid, prod, 0.0)
                ssum = jnp.where(valid, ssum, 0.0)
            # Pure VPU accumulation into VMEM scratch; no XLU reduce here.
            acc_i_ref[:, :cw] += prod
            acc_s_ref[:, :cw] += ssum

    if ns * kps == k_steps:
        _accumulate()
    else:
        # Reduction split across TensorCores: skip the clamped padding step.
        pl.when(global_k < k_steps)(_accumulate)

    @pl.when(k == kps - 1)
    def _finalize():
        # Single cross-lane (XLU) reduce + tiny output store per row group.
        inter_ref[0] = jnp.sum(acc_i_ref[...], axis=1, keepdims=True)
        s12_ref[0] = jnp.sum(acc_s_ref[...], axis=1, keepdims=True)


def soft_dice_loss(logits, targets, *, smooth=0.001, apply_sigmoid=False):
    # Matches the PyTorch module: `logits` are used as-is (probabilities);
    # set apply_sigmoid=True to fuse the activation into the kernel.
    assert logits.shape == targets.shape, "the size of predict and target must be equal."
    n = logits.shape[0]
    # NOTE: this flatten mirrors PyTorch's .view(num, -1); for >2-D inputs XLA
    # may relayout once here, but the kernel itself adds no extra HBM passes.
    m1 = logits.reshape(n, -1)
    m2 = targets.reshape(n, -1)
    d = m1.shape[1]

    # ---- generation-aware VMEM budget ------------------------------------
    cap = _vmem_capacity_bytes()
    if cap >= 100 * 1024 * 1024:          # v5e / v6e: 128 MiB physical VMEM
        block_budget = 12 * 1024 * 1024   # per-input block (f32 accounting)
        vmem_limit = 64 * 1024 * 1024
    else:                                 # v7x (64 MiB) or unknown
        block_budget = 8 * 1024 * 1024
        vmem_limit = 48 * 1024 * 1024

    # ---- tiling (all static) ----------------------------------------------
    tn = n if n < 8 else 8                # rows per block
    vmem_rows = _round_up(tn, 8)          # sublane-padded rows in VMEM
    gi = pl.cdiv(n, tn)                   # row groups

    d128 = _round_up(d, _LANE)
    td_budget = max(_CHUNK, (block_budget // (vmem_rows * 4)) // _CHUNK * _CHUNK)
    td = d128 if d128 <= td_budget else td_budget   # lane width per block
    k_steps = pl.cdiv(d, td)

    # v7x: with a single row group the leading 'parallel' axis would have
    # extent 1 (one TensorCore idle) — split the reduction range instead.
    ns = 2 if (gi == 1 and k_steps >= 2) else 1
    kps = pl.cdiv(k_steps, ns)
    cw_max = min(_CHUNK, td)

    kernel = functools.partial(
        _soft_dice_kernel, d=d, td=td, kps=kps, k_steps=k_steps, ns=ns,
        apply_sigmoid=apply_sigmoid)

    def in_map(s, i, k):
        return (i, jnp.minimum(s * kps + k, k_steps - 1))

    inter, s12 = pl.pallas_call(
        kernel,
        out_shape=(
            jax.ShapeDtypeStruct((ns, n, 1), jnp.float32),
            jax.ShapeDtypeStruct((ns, n, 1), jnp.float32),
        ),
        grid_spec=pltpu.PrefetchScalarGridSpec(
            num_scalar_prefetch=0,
            grid=(ns, gi, kps),
            in_specs=[
                pl.BlockSpec((tn, td), in_map),
                pl.BlockSpec((tn, td), in_map),
            ],
            out_specs=[
                pl.BlockSpec((1, tn, 1), lambda s, i, k: (s, i, 0)),
                pl.BlockSpec((1, tn, 1), lambda s, i, k: (s, i, 0)),
            ],
            scratch_shapes=[
                pltpu.VMEM((tn, cw_max), jnp.float32),
                pltpu.VMEM((tn, cw_max), jnp.float32),
            ],
        ),
        compiler_params=pltpu.CompilerParams(
            dimension_semantics=("parallel", "parallel", "arbitrary"),
            vmem_limit_bytes=vmem_limit,
        ),
    )(m1, m2)

    inter = jnp.sum(inter[:, :, 0], axis=0)   # (n,)
    s12 = jnp.sum(s12[:, :, 0], axis=0)       # (n,)
    score = 2.0 * (inter + smooth) / (s12 + smooth)
    return 1.0 - jnp.sum(score) / n


def soft_dice_loss_ref(logits, targets, smooth=0.001):
    num = logits.shape[0]
    m1 = logits.reshape(num, -1).astype(jnp.float32)
    m2 = targets.reshape(num, -1).astype(jnp.float32)
    inter = jnp.sum(m1 * m2, axis=1)
    score = 2.0 * (inter + smooth) / (jnp.sum(m1, axis=1) + jnp.sum(m2, axis=1) + smooth)
    return 1.0 - jnp.sum(score) / num


if __name__ == "__main__":
    key = jax.random.PRNGKey(0)
    k1, k2 = jax.random.split(key)
    # NCHW inputs, consistent with the PyTorch module's usage (predictions are
    # probabilities, targets are 0/1 masks).
    logits = jax.nn.sigmoid(jax.random.normal(k1, (2, 4, 16, 16), dtype=jnp.float32))
    targets = (jax.random.uniform(k2, (2, 4, 16, 16)) > 0.5).astype(jnp.float32)

    loss = jax.block_until_ready(soft_dice_loss(logits, targets))
    ref = jax.block_until_ready(soft_dice_loss_ref(logits, targets))

    assert jnp.allclose(loss, ref, atol=1e-5, rtol=1e-5), (loss, ref)
    print("KERNEL_OK")
</pallas_src>

<mosaic_0001>
module attributes {stable_mosaic.version = 11 : i64} {
  func.func @_soft_dice_kernel(%arg0: i32, %arg1: i32, %arg2: i32, %arg3: memref<2x1024xf32, #tpu.memory_space<vmem>>, %arg4: memref<2x1024xf32, #tpu.memory_space<vmem>>, %arg5: memref<1x2x1xf32, #tpu.memory_space<vmem>>, %arg6: memref<1x2x1xf32, #tpu.memory_space<vmem>>, %arg7: memref<2x1024xf32, #tpu.memory_space<vmem>>, %arg8: memref<2x1024xf32, #tpu.memory_space<vmem>>) attributes {dimension_semantics = [#tpu.dimension_semantics<parallel>, #tpu.dimension_semantics<parallel>, #tpu.dimension_semantics<arbitrary>], iteration_bounds = array<i64: 1, 1, 1>, scalar_prefetch = 0 : i64, scratch_operands = 2 : i64, tpu.core_type = #tpu.core_type<tc>, window_params = [{transform_indices = @transform_0, window_bounds = array<i64: 2, 1024>}, {transform_indices = @transform_1, window_bounds = array<i64: 2, 1024>}, {transform_indices = @transform_2, window_bounds = array<i64: 1, 2, 1>}, {transform_indices = @transform_3, window_bounds = array<i64: 1, 2, 1>}]} {
    %c0_i32 = arith.constant 0 : i32
    %0 = arith.cmpi eq, %arg2, %c0_i32 : i32
    %1 = arith.extui %0 : i1 to i32
    %c0_i32_0 = arith.constant 0 : i32
    %2 = arith.cmpi ne, %1, %c0_i32_0 : i32
    scf.if %2 {
      %cst = arith.constant 0.000000e+00 : f32
      %16 = vector.broadcast %cst : f32 to vector<2x1024xf32>
      %c0_14 = arith.constant 0 : index
      %c0_15 = arith.constant 0 : index
      %17 = vector.load %arg7[%c0_14, %c0_15] : memref<2x1024xf32, #tpu.memory_space<vmem>>, vector<2x1024xf32>
      tpu.vector_store %arg7[%c0_14, %c0_15], %16 {strides = array<i32>} : memref<2x1024xf32, #tpu.memory_space<vmem>>, vector<2x1024xf32>,
      %cst_16 = arith.constant 0.000000e+00 : f32
      %18 = vector.broadcast %cst_16 : f32 to vector<2x1024xf32>
      %c0_17 = arith.constant 0 : index
      %c0_18 = arith.constant 0 : index
      %19 = vector.load %arg8[%c0_17, %c0_18] : memref<2x1024xf32, #tpu.memory_space<vmem>>, vector<2x1024xf32>
      tpu.vector_store %arg8[%c0_17, %c0_18], %18 {strides = array<i32>} : memref<2x1024xf32, #tpu.memory_space<vmem>>, vector<2x1024xf32>,
    } else {
    }
    %c0 = arith.constant 0 : index
    %c0_1 = arith.constant 0 : index
    %3 = vector.load %arg3[%c0, %c0_1] : memref<2x1024xf32, #tpu.memory_space<vmem>>, vector<2x1024xf32>
    %c0_2 = arith.constant 0 : index
    %c0_3 = arith.constant 0 : index
    %4 = vector.load %arg4[%c0_2, %c0_3] : memref<2x1024xf32, #tpu.memory_space<vmem>>, vector<2x1024xf32>
    %5 = arith.mulf %3, %4 : vector<2x1024xf32>
    %6 = arith.addf %3, %4 : vector<2x1024xf32>
    %c0_4 = arith.constant 0 : index
    %c0_5 = arith.constant 0 : index
    %7 = vector.load %arg7[%c0_4, %c0_5] : memref<2x1024xf32, #tpu.memory_space<vmem>>, vector<2x1024xf32>
    %8 = arith.addf %7, %5 : vector<2x1024xf32>
    %c0_6 = arith.constant 0 : index
    %c0_7 = arith.constant 0 : index
    %9 = vector.load %arg7[%c0_6, %c0_7] : memref<2x1024xf32, #tpu.memory_space<vmem>>, vector<2x1024xf32>
    tpu.vector_store %arg7[%c0_6, %c0_7], %8 {strides = array<i32>} : memref<2x1024xf32, #tpu.memory_space<vmem>>, vector<2x1024xf32>,
    %c0_8 = arith.constant 0 : index
    %c0_9 = arith.constant 0 : index
    %10 = vector.load %arg8[%c0_8, %c0_9] : memref<2x1024xf32, #tpu.memory_space<vmem>>, vector<2x1024xf32>
    %11 = arith.addf %10, %6 : vector<2x1024xf32>
    %c0_10 = arith.constant 0 : index
    %c0_11 = arith.constant 0 : index
    %12 = vector.load %arg8[%c0_10, %c0_11] : memref<2x1024xf32, #tpu.memory_space<vmem>>, vector<2x1024xf32>
    tpu.vector_store %arg8[%c0_10, %c0_11], %11 {strides = array<i32>} : memref<2x1024xf32, #tpu.memory_space<vmem>>, vector<2x1024xf32>,
    %c0_i32_12 = arith.constant 0 : i32
    %13 = arith.cmpi eq, %arg2, %c0_i32_12 : i32
    %14 = arith.extui %13 : i1 to i32
    %c0_i32_13 = arith.constant 0 : i32
    %15 = arith.cmpi ne, %14, %c0_i32_13 : i32
    scf.if %15 {
      %c0_14 = arith.constant 0 : index
      %c0_15 = arith.constant 0 : index
      %16 = vector.load %arg7[%c0_14, %c0_15] : memref<2x1024xf32, #tpu.memory_space<vmem>>, vector<2x1024xf32>
      %cst = arith.constant dense<0.000000e+00> : vector<2xf32>
      %17 = vector.multi_reduction <add>, %16, %cst [1] : vector<2x1024xf32> to vector<2xf32>
      %18 = vector.shape_cast %17 : vector<2xf32> to vector<2x1xf32>
      %c0_16 = arith.constant 0 : index
      %c0_17 = arith.constant 0 : index
      %c0_18 = arith.constant 0 : index
      %19 = vector.load %arg5[%c0_16, %c0_17, %c0_18] : memref<1x2x1xf32, #tpu.memory_space<vmem>>, vector<1x2x1xf32>
      %20 = vector.shape_cast %19 : vector<1x2x1xf32> to vector<2x1xf32>
      %21 = vector.shape_cast %18 : vector<2x1xf32> to vector<1x2x1xf32>
      tpu.vector_store %arg5[%c0_16, %c0_17, %c0_18], %21 {strides = array<i32>} : memref<1x2x1xf32, #tpu.memory_space<vmem>>, vector<1x2x1xf32>,
      %c0_19 = arith.constant 0 : index
      %c0_20 = arith.constant 0 : index
      %22 = vector.load %arg8[%c0_19, %c0_20] : memref<2x1024xf32, #tpu.memory_space<vmem>>, vector<2x1024xf32>
      %cst_21 = arith.constant dense<0.000000e+00> : vector<2xf32>
      %23 = vector.multi_reduction <add>, %22, %cst_21 [1] : vector<2x1024xf32> to vector<2xf32>
      %24 = vector.shape_cast %23 : vector<2xf32> to vector<2x1xf32>
      %c0_22 = arith.constant 0 : index
      %c0_23 = arith.constant 0 : index
      %c0_24 = arith.constant 0 : index
      %25 = vector.load %arg6[%c0_22, %c0_23, %c0_24] : memref<1x2x1xf32, #tpu.memory_space<vmem>>, vector<1x2x1xf32>
      %26 = vector.shape_cast %25 : vector<1x2x1xf32> to vector<2x1xf32>
      %27 = vector.shape_cast %24 : vector<2x1xf32> to vector<1x2x1xf32>
      tpu.vector_store %arg6[%c0_22, %c0_23, %c0_24], %27 {strides = array<i32>} : memref<1x2x1xf32, #tpu.memory_space<vmem>>, vector<1x2x1xf32>,
    } else {
    }
    return
  }
  func.func @transform_0(%arg0: i32, %arg1: i32, %arg2: i32) -> (i32, i32) {
    %c1_i32 = arith.constant 1 : i32
    %0 = arith.muli %arg0, %c1_i32 : i32
    %1 = arith.addi %0, %arg2 : i32
    %c0_i32 = arith.constant 0 : i32
    %2 = arith.minsi %1, %c0_i32 : i32
    %c0_i32_0 = arith.constant 0 : i32
    return %arg1, %2 : i32, i32
  }
  func.func @transform_1(%arg0: i32, %arg1: i32, %arg2: i32) -> (i32, i32) {
    %c1_i32 = arith.constant 1 : i32
    %0 = arith.muli %arg0, %c1_i32 : i32
    %1 = arith.addi %0, %arg2 : i32
    %c0_i32 = arith.constant 0 : i32
    %2 = arith.minsi %1, %c0_i32 : i32
    %c0_i32_0 = arith.constant 0 : i32
    return %arg1, %2 : i32, i32
  }
  func.func @transform_2(%arg0: i32, %arg1: i32, %arg2: i32) -> (i32, i32, i32) {
    %c0_i32 = arith.constant 0 : i32
    %c0_i32_0 = arith.constant 0 : i32
    return %arg0, %arg1, %c0_i32 : i32, i32, i32
  }
  func.func @transform_3(%arg0: i32, %arg1: i32, %arg2: i32) -> (i32, i32, i32) {
    %c0_i32 = arith.constant 0 : i32
    %c0_i32_0 = arith.constant 0 : i32
    return %arg0, %arg1, %c0_i32 : i32, i32, i32
  }
}

</mosaic_0001>

<llo_original>
// kernel: tpu_custom_call.1
$region0: #{tpu_custom_call.1}
  #allocation0 [shape = 'u32[]', space=smem, size = 0x4, offset = 0x4, fixed_abs, tag = 'smem constant byte address 0x4 - core index']
  #allocation1 [shape = 'u32[72,128]{1,0:T(1,128)}', space=vmem, size = 0x9000, scoped, tag = 'internal scratch']
  #allocation2 [shape = 'f32[2,1024]{1,0:T(2,128)}', space=vmem, size = 0x2000, scoped, tag = 'scratch operand']
  #allocation3 [shape = 'f32[2,1024]{1,0:T(2,128)}', space=vmem, size = 0x2000, scoped, tag = 'scratch operand']
  %s0 = inlined_call_operand.hbm [shape: f32[2,1024], index: 0, kind: input, shape index: {}]
  %s1 = inlined_call_operand.hbm [shape: f32[2,1024], index: 1, kind: input, shape index: {}]
  %s2 = inlined_call_operand.vmem [shape: f32[1,2,1], index: 2, kind: output, shape index: {0}]
  %s3 = inlined_call_operand.vmem [shape: f32[1,2,1], index: 3, kind: output, shape index: {1}]
  %4 = xla_tuple %s2, %s3
  %s5 = sld [smem:[#allocation0]]
  $region42: #{tpu_custom_call.1} parent=0
    _
  %s7 = ssub.s32 1, %s5
  %s8 = scalar_select 0, %s7, %s5
  $region1: #{tpu_custom_call.1} parent=0
    #allocation4 [shape = 'u8[8192]{0}', space=vmem, size = 0x2000, scoped, tag = 'input window, operand 0, single buffered']
    #allocation5 [shape = 's32[1]{0}', space=sflag, size = 0x4, scoped, tag = 'scoped memory for tpu_custom_call.1']
    #allocation6 [shape = 'u8[8192]{0}', space=vmem, size = 0x2000, scoped, tag = 'input window, operand 1, single buffered']
    #allocation7 [shape = 's32[1]{0}', space=sflag, size = 0x4, scoped, tag = 'scoped memory for tpu_custom_call.1']
    %9 = vsyncpa [#allocation5], 0
    %10 = vsyncpa [#allocation7], 0
    // Predicated region
    $region2: #{tpu_custom_call.1} parent=1 // pred_check
      _
    $region3: #{tpu_custom_call.1} parent=1 // pred_check_branch
      %12 = sbr.rel (0) target = $region5
    $region4: #{tpu_custom_call.1} parent=1 // pred_region
      %s13 = sadd.s32 0, 0
      %p14 = scmp.lt.s32.totalorder %s13, 0
      %s15 = scalar_select %p14, %s13, 0
      %s16 = smul.u32 8, %s15
      %18 = vsyncadd [#allocation5], 0
      %s19 = smul.addr %s16, 2
      %s20 = scalar_lea.hbm %s0, %s19
      %s22 = sshll.u32 %s20, 4
      %s23 = int_to_ptr.hbm [resolvable:$true] %s22
      %s24 = sshll.u32 [#allocation4], 4
      %s25 = int_to_ptr.vmem [resolvable:$true] %s24
      %27 = dma.hbm_to_vmem [thread:$0]  %s23, 256, %s25, [#allocation5]
    $region5: #{tpu_custom_call.1} parent=1 // pred_fallthru
      _
    // Predicated region
    $region6: #{tpu_custom_call.1} parent=1 // pred_check
      _
    $region7: #{tpu_custom_call.1} parent=1 // pred_check_branch
      %29 = sbr.rel (0) target = $region9
    $region8: #{tpu_custom_call.1} parent=1 // pred_region
      %s30 = sadd.s32 0, 0
      %p31 = scmp.lt.s32.totalorder %s30, 0
      %s32 = scalar_select %p31, %s30, 0
      %s33 = smul.u32 8, %s32
      %35 = vsyncadd [#allocation7], 0
      %s36 = smul.addr %s33, 2
      %s37 = scalar_lea.hbm %s1, %s36
      %s39 = sshll.u32 %s37, 4
      %s40 = int_to_ptr.hbm [resolvable:$true] %s39
      %s41 = sshll.u32 [#allocation6], 4
      %s42 = int_to_ptr.vmem [resolvable:$true] %s41
      %44 = dma.hbm_to_vmem [thread:$0]  %s40, 256, %s42, [#allocation7]
    $region9: #{tpu_custom_call.1} parent=1 // pred_fallthru
      _
    // Predicated region
    $region10: #{tpu_custom_call.1} parent=1 // pred_check
      _
    $region11: #{tpu_custom_call.1} parent=1 // pred_check_branch
      %46 = sbr.rel (0) target = $region13
    $region12: #{tpu_custom_call.1} parent=1 // pred_region
      %48 = dma.done [#allocation5], 256
    $region13: #{tpu_custom_call.1} parent=1 // pred_fallthru
      _
    // Predicated region
    $region14: #{tpu_custom_call.1} parent=1 // pred_check
      _
    $region15: #{tpu_custom_call.1} parent=1 // pred_check_branch
      %50 = sbr.rel (0) target = $region17
    $region16: #{tpu_custom_call.1} parent=1 // pred_region
      %52 = dma.done [#allocation7], 256
    $region17: #{tpu_custom_call.1} parent=1 // pred_fallthru
      _
    %s53 = sadd.s32 0, 0
    %p54 = scmp.lt.s32.totalorder %s53, 0
    %s55 = scalar_select %p54, %s53, 0
    %s56 = smul.u32 8, %s55
    %s57 = sadd.s32 0, 0
    %p58 = scmp.lt.s32.totalorder %s57, 0
    %s59 = scalar_select %p58, %s57, 0
    %s60 = smul.u32 8, %s59
    %p61 = scmp.eq.s32.totalorder 0, 0
    // Predicated region
    $region18: #{tpu_custom_call.1} parent=1 // pred_check
      %p62 = pneg %p61
    $region19: #{tpu_custom_call.1} parent=1 // pred_check_branch
      %64 = sbr.rel (%p62) target = $region21
    $region20: #{tpu_custom_call.1} parent=1 // pred_region
      %65 = vst [vmem:[#allocation2] sm:$0xff] 0.0
      %66 = vst [vmem:[#allocation2 + $0x8] sm:$0xff] 0.0
      %67 = vst [vmem:[#allocation3] sm:$0xff] 0.0
      %68 = vst [vmem:[#allocation3 + $0x8] sm:$0xff] 0.0
    $region21: #{tpu_custom_call.1} parent=1 // pred_fallthru
      _
    %v69 = vld [vmem:[#allocation4] sm:$0xff]
    %v70 = vld [vmem:[#allocation4 + $0x8] sm:$0xff]
    %v71 = vld [vmem:[#allocation6] sm:$0xff]
    %v72 = vld [vmem:[#allocation6 + $0x8] sm:$0xff]
    %v73 = vmul.f32 %v69, %v71
    %v74 = vmul.f32 %v70, %v72
    %v75 = vadd.f32 %v69, %v71
    %v76 = vadd.f32 %v70, %v72
    %v77 = vld [vmem:[#allocation2] sm:$0xff]
    %v78 = vld [vmem:[#allocation2 + $0x8] sm:$0xff]
    %v79 = vadd.f32 %v77, %v73
    %v80 = vadd.f32 %v78, %v74
    %81 = vst [vmem:[#allocation2] sm:$0xff] %v79
    %82 = vst [vmem:[#allocation2 + $0x8] sm:$0xff] %v80
    %v83 = vld [vmem:[#allocation3] sm:$0xff]
    %v84 = vld [vmem:[#allocation3 + $0x8] sm:$0xff]
    %v85 = vadd.f32 %v83, %v75
    %v86 = vadd.f32 %v84, %v76
    %87 = vst [vmem:[#allocation3] sm:$0xff] %v85
    %88 = vst [vmem:[#allocation3 + $0x8] sm:$0xff] %v86
    // Predicated region
    $region22: #{tpu_custom_call.1} parent=1 // pred_check
      %p89 = pneg %p61
    $region23: #{tpu_custom_call.1} parent=1 // pred_check_branch
      %91 = sbr.rel (%p89) target = $region25
    $region24: #{tpu_custom_call.1} parent=1 // pred_region
      %v92 = vld [vmem:[#allocation2] sm:$0xff]
      %v93 = vld [vmem:[#allocation2 + $0x8] sm:$0xff]
      %96 = vst [vmem:[#allocation1] ss:$4 sm:$0xff] %v92
      %s97 = scalar_lea.vmem [#allocation1], 32
      %98 = vst [vmem:[%s97] ss:$4 sm:$0xff] %v93
      %v99 = vld.sshfl [vmem:[#allocation1] sm:$0xff pattern:$0x73625140]
      %v100 = vld.sshfl [vmem:[#allocation1 + $0x8] sm:$0xff pattern:$0x73625140]
      %v101 = vld.sshfl [vmem:[#allocation1 + $0x10] sm:$0xff pattern:$0x73625140]
      %v102 = vld.sshfl [vmem:[#allocation1 + $0x18] sm:$0xff pattern:$0x73625140]
      %v103 = vld.sshfl [vmem:[#allocation1 + $0x20] sm:$0xff pattern:$0x73625140]
      %v104 = vld.sshfl [vmem:[#allocation1 + $0x28] sm:$0xff pattern:$0x73625140]
      %v105 = vld.sshfl [vmem:[#allocation1 + $0x30] sm:$0xff pattern:$0x73625140]
      %v106 = vld.sshfl [vmem:[#allocation1 + $0x38] sm:$0xff pattern:$0x73625140]
      %vm115 = vcmask 1041408
      %v116 = vsel %vm115, %v99, 0.0
      %v117 = vsel %vm115, %v100, 0.0
      %v118 = vadd.f32 %v116, %v117
      %v119 = vsel %vm115, %v101, 0.0
      %v120 = vadd.f32 %v118, %v119
      %v121 = vsel %vm115, %v102, 0.0
      %v122 = vadd.f32 %v120, %v121
      %v123 = vsel %vm115, %v103, 0.0
      %v124 = vadd.f32 %v122, %v123
      %v125 = vsel %vm115, %v104, 0.0
      %v126 = vadd.f32 %v124, %v125
      %v127 = vsel %vm115, %v105, 0.0
      %v128 = vadd.f32 %v126, %v127
      %v129 = vsel %vm115, %v106, 0.0
      %v130 = vadd.f32 %v128, %v129
      %131 = vadd.xlane.f32.xlu0 %v130
      %v132 = vpop.xlane.xlu0 %131
      %vm133 = vcmask 1024
      %134 = vst.msk [vmem:[%s2] sm:$0x3] %vm133, %v132
      %v135 = vld [vmem:[#allocation3] sm:$0xff]
      %v136 = vld [vmem:[#allocation3 + $0x8] sm:$0xff]
      %139 = vst [vmem:[#allocation1] ss:$4 sm:$0xff] %v135
      %s140 = scalar_lea.vmem [#allocation1], 32
      %141 = vst [vmem:[%s140] ss:$4 sm:$0xff] %v136
      %v142 = vld.sshfl [vmem:[#allocation1] sm:$0xff pattern:$0x73625140]
      %v143 = vld.sshfl [vmem:[#allocation1 + $0x8] sm:$0xff pattern:$0x73625140]
      %v144 = vld.sshfl [vmem:[#allocation1 + $0x10] sm:$0xff pattern:$0x73625140]
      %v145 = vld.sshfl [vmem:[#allocation1 + $0x18] sm:$0xff pattern:$0x73625140]
      %v146 = vld.sshfl [vmem:[#allocation1 + $0x20] sm:$0xff pattern:$0x73625140]
      %v147 = vld.sshfl [vmem:[#allocation1 + $0x28] sm:$0xff pattern:$0x73625140]
      %v148 = vld.sshfl [vmem:[#allocation1 + $0x30] sm:$0xff pattern:$0x73625140]
      %v149 = vld.sshfl [vmem:[#allocation1 + $0x38] sm:$0xff pattern:$0x73625140]
      %v158 = vsel %vm115, %v142, 0.0
      %v159 = vsel %vm115, %v143, 0.0
      %v160 = vadd.f32 %v158, %v159
      %v161 = vsel %vm115, %v144, 0.0
      %v162 = vadd.f32 %v160, %v161
      %v163 = vsel %vm115, %v145, 0.0
      %v164 = vadd.f32 %v162, %v163
      %v165 = vsel %vm115, %v146, 0.0
      %v166 = vadd.f32 %v164, %v165
      %v167 = vsel %vm115, %v147, 0.0
      %v168 = vadd.f32 %v166, %v167
      %v169 = vsel %vm115, %v148, 0.0
      %v170 = vadd.f32 %v168, %v169
      %v171 = vsel %vm115, %v149, 0.0
      %v172 = vadd.f32 %v170, %v171
      %173 = vadd.xlane.f32.xlu0 %v172
      %v174 = vpop.xlane.xlu0 %173
      %175 = vst.msk [vmem:[%s3] sm:$0x3] %vm133, %v174
    $region25: #{tpu_custom_call.1} parent=1 // pred_fallthru
      _
    // Predicated region
    $region26: #{tpu_custom_call.1} parent=1 // pred_check
      _
    $region27: #{tpu_custom_call.1} parent=1 // pred_check_branch
      %177 = sbr.rel (0) target = $region29
    $region28: #{tpu_custom_call.1} parent=1 // pred_region
      _
    $region29: #{tpu_custom_call.1} parent=1 // pred_fallthru
      _
    // Predicated region
    $region30: #{tpu_custom_call.1} parent=1 // pred_check
      _
    $region31: #{tpu_custom_call.1} parent=1 // pred_check_branch
      %179 = sbr.rel (0) target = $region33
    $region32: #{tpu_custom_call.1} parent=1 // pred_region
      _
    $region33: #{tpu_custom_call.1} parent=1 // pred_fallthru
      _
    // Predicated region
    $region34: #{tpu_custom_call.1} parent=1 // pred_check
      _
    $region35: #{tpu_custom_call.1} parent=1 // pred_check_branch
      %181 = sbr.rel (0) target = $region37
    $region36: #{tpu_custom_call.1} parent=1 // pred_region
      _
    $region37: #{tpu_custom_call.1} parent=1 // pred_fallthru
      _
    // Predicated region
    $region38: #{tpu_custom_call.1} parent=1 // pred_check
      _
    $region39: #{tpu_custom_call.1} parent=1 // pred_check_branch
      %183 = sbr.rel (0) target = $region41
    $region40: #{tpu_custom_call.1} parent=1 // pred_region
      _
    $region41: #{tpu_custom_call.1} parent=1 // pred_fallthru
      _
    %184 = vsyncpa [#allocation5], 1
    %185 = vsyncpa [#allocation7], 1

</llo_original>
